<compile_context>
chip_gen: v7x
topology: tpu7x:2x2x1
jax: 0.10.0
libtpu: 0.0.40
codegen_flags: <defaults>
</compile_context>

<pallas_src>
import jax
import jax.numpy as jnp
from jax.experimental import pallas as pl
from jax.experimental.pallas import tpu as pltpu

LANES = 128
TARGET_BLOCK_BYTES = 4 * 1024 * 1024    # ~4 MiB per block (v7x-friendly)
VMEM_LIMIT_BYTES = 28 * 1024 * 1024     # 4 blocks double-buffered + slack;
                                        # explicit so v5e's 16 MiB default
                                        # scoped limit is not the cap.


def _round_up(v, m):
    return ((v + m - 1) // m) * m


def _sublane_multiple(itemsize):
    # Packed sublane tile: f32 -> 8, bf16 -> 16, int8/fp8 -> 32.
    return max(8, 32 // max(1, itemsize))


def _laplacian_kernel(neg_inv_a_ref, x_ref, o_ref):
    # bf16-native compute for bf16 inputs (v6e/v7x VPU+EUP have bf16 paths;
    # on v5e Mosaic extends to f32 internally). Everything else runs in f32.
    cdt = jnp.bfloat16 if o_ref.dtype == jnp.bfloat16 else jnp.float32
    neg_inv_a = neg_inv_a_ref[0].astype(cdt)      # SMEM scalar: -1/a
    x = x_ref[...].astype(cdt)
    o_ref[...] = jnp.exp(jnp.abs(x) * neg_inv_a).astype(o_ref.dtype)


def _row_tile(R, itemsize, sub):
    """Row tile for the lane-dense (R, 128) fast path."""
    tm = max(sub, (TARGET_BLOCK_BYTES // (LANES * itemsize)) // sub * sub)
    tm = min(tm, R)
    # Guarantee >= 2 (balanced) grid steps when possible so v7x megacore
    # actually engages both TensorCores on small/medium tensors.
    if pl.cdiv(R, tm) <= 2 and R > sub:
        tm = min(tm, _round_up(pl.cdiv(R, 2), sub))
    return tm


def _ragged_tiles(R, L, itemsize, sub):
    """(row, lane) tiles for the pad-free ragged 2-D view (R, L)."""
    target = max(LANES * sub, TARGET_BLOCK_BYTES // itemsize)   # elements
    lane_padded = _round_up(L, LANES)
    if sub * lane_padded <= target:
        # Keep rows whole; block only over rows (last block sublane-masked).
        tl = L
        max_rows = max(sub, (target // lane_padded) // sub * sub)
        tm = min(R, max_rows)
        if pl.cdiv(R, tm) <= 2 and R > sub:
            tm = min(tm, _round_up(pl.cdiv(R, 2), sub))
    else:
        # A single sub-row group is already too big -> block the lane dim too
        # (last block lane-masked).
        tm = min(R, sub)
        tl = max(LANES, ((target // sub) // LANES) * LANES)
        tl = min(tl, lane_padded)
    return tm, tl


def laplacian_activation(x, a):
    """x: any-shape float array. a: scalar (python float or 0-d/1-elem array)."""
    orig_shape = x.shape
    orig_dtype = x.dtype
    n = x.size
    if n == 0:
        return x
    itemsize = jnp.dtype(orig_dtype).itemsize
    sub = _sublane_multiple(itemsize)

    # Precompute -1/a in f32 so the kernel has no divide.
    a_scalar = jnp.asarray(a, dtype=jnp.float32).reshape(())
    neg_inv_a = (-1.0 / a_scalar).reshape(1)

    if n % LANES == 0:
        # Fast path: lane-dense (R, 128) view -- pure metadata reshape,
        # unmasked full-width stores.
        R = n // LANES
        x2d = x.reshape(R, LANES)
        tm, tl = _row_tile(R, itemsize, sub), LANES
    else:
        # Ragged path: collapse leading dims into rows; zero extra HBM passes
        # (no pad, no slice). Partial edge blocks are masked by Pallas.
        L = x.shape[-1] if x.ndim >= 1 else 1
        x2d = x.reshape(-1, L)
        R, L = x2d.shape
        tm, tl = _ragged_tiles(R, L, itemsize, sub)

    grid = (pl.cdiv(x2d.shape[0], tm), pl.cdiv(x2d.shape[1], tl))

    out2d = pl.pallas_call(
        _laplacian_kernel,
        out_shape=jax.ShapeDtypeStruct(x2d.shape, orig_dtype),
        grid_spec=pltpu.PrefetchScalarGridSpec(
            num_scalar_prefetch=0,
            grid=grid,
            in_specs=[
                pl.BlockSpec(memory_space=pltpu.MemorySpace.SMEM),   # -1/a
                pl.BlockSpec((tm, tl), lambda i, j: (i, j)),
            ],
            out_specs=pl.BlockSpec((tm, tl), lambda i, j: (i, j)),
        ),
        compiler_params=pltpu.CompilerParams(
            dimension_semantics=("parallel", "parallel"),
            vmem_limit_bytes=VMEM_LIMIT_BYTES,
        ),
        cost_estimate=pl.CostEstimate(
            flops=2 * n,
            transcendentals=n,
            bytes_accessed=2 * n * itemsize,
        ),
    )(neg_inv_a, x2d)

    return out2d.reshape(orig_shape)


if __name__ == "__main__":
    key = jax.random.PRNGKey(0)
    k1, k2, k3 = jax.random.split(key, 3)

    # 1) NCHW conv-activation style input (aligned fast path, 2 grid steps
    #    so both v7x TensorCores get work).
    x = jax.random.normal(k1, (2, 4, 16, 16), dtype=jnp.float32)
    a_param = jnp.ones((1,), dtype=jnp.float32) * 1.0   # nn.Parameter(a*ones(1)), a=1.0
    out = jax.block_until_ready(laplacian_activation(x, a_param))
    ref = jnp.exp(-jnp.abs(x) / a_param[0])
    assert out.shape == x.shape and out.dtype == x.dtype
    assert float(jnp.max(jnp.abs(out - ref))) < 1e-6

    # 2) Ragged element count + non-unit 'a': pad-free ragged path with a
    #    sublane-masked edge block.
    x2 = jax.random.normal(k2, (3, 5, 7), dtype=jnp.float32)
    out2 = jax.block_until_ready(laplacian_activation(x2, 1.5))
    ref2 = jnp.exp(-jnp.abs(x2) / 1.5)
    assert out2.shape == x2.shape and out2.dtype == x2.dtype
    assert float(jnp.max(jnp.abs(out2 - ref2))) < 1e-5

    # 3) bf16 input: native bf16 VPU/EUP compute path (loose tolerance —
    #    exp argument is quantized to bf16 by design).
    x3 = jax.random.normal(k3, (4, 256), dtype=jnp.bfloat16)
    out3 = jax.block_until_ready(laplacian_activation(x3, 2.0))
    ref3 = jnp.exp(-jnp.abs(x3.astype(jnp.float32)) / 2.0)
    assert out3.shape == x3.shape and out3.dtype == x3.dtype
    assert float(jnp.max(jnp.abs(out3.astype(jnp.float32) - ref3))) < 0.05

    print("KERNEL_OK")
</pallas_src>

<mosaic_0001>
module attributes {stable_mosaic.version = 11 : i64} {
  func.func @_laplacian_kernel(%arg0: i32, %arg1: i32, %arg2: memref<1xf32, #tpu.memory_space<smem>>, %arg3: memref<8x128xf32, #tpu.memory_space<vmem>>, %arg4: memref<8x128xf32, #tpu.memory_space<vmem>>) attributes {dimension_semantics = [#tpu.dimension_semantics<parallel>, #tpu.dimension_semantics<parallel>], iteration_bounds = array<i64: 2, 1>, scalar_prefetch = 0 : i64, scratch_operands = 0 : i64, tpu.core_type = #tpu.core_type<tc>, window_params = [{transform_indices = @transform_0, window_bounds = array<i64: 1>}, {transform_indices = @transform_1, window_bounds = array<i64: 8, 128>}, {transform_indices = @transform_2, window_bounds = array<i64: 8, 128>}]} {
    %c0 = arith.constant 0 : index
    %0 = memref.load %arg2[%c0] : memref<1xf32, #tpu.memory_space<smem>>
    %c0_0 = arith.constant 0 : index
    %c0_1 = arith.constant 0 : index
    %1 = vector.load %arg3[%c0_0, %c0_1] : memref<8x128xf32, #tpu.memory_space<vmem>>, vector<8x128xf32>
    %2 = math.absf %1 : vector<8x128xf32>
    %3 = vector.broadcast %0 : f32 to vector<8x128xf32>
    %4 = arith.mulf %2, %3 : vector<8x128xf32>
    %5 = math.exp %4 : vector<8x128xf32>
    %c0_2 = arith.constant 0 : index
    %c0_3 = arith.constant 0 : index
    %6 = vector.load %arg4[%c0_2, %c0_3] : memref<8x128xf32, #tpu.memory_space<vmem>>, vector<8x128xf32>
    tpu.vector_store %arg4[%c0_2, %c0_3], %5 {strides = array<i32>} : memref<8x128xf32, #tpu.memory_space<vmem>>, vector<8x128xf32>,
    return
  }
  func.func @transform_0(%arg0: i32, %arg1: i32) -> i32 {
    %c0_i32 = arith.constant 0 : i32
    %c0_i32_0 = arith.constant 0 : i32
    return %c0_i32 : i32
  }
  func.func @transform_1(%arg0: i32, %arg1: i32) -> (i32, i32) {
    %c0_i32 = arith.constant 0 : i32
    return %arg0, %arg1 : i32, i32
  }
  func.func @transform_2(%arg0: i32, %arg1: i32) -> (i32, i32) {
    %c0_i32 = arith.constant 0 : i32
    return %arg0, %arg1 : i32, i32
  }
}

</mosaic_0001>

<llo_original>
// kernel: tpu_custom_call.1
$region0: #{tpu_custom_call.1}
  #allocation0 [shape = 'u32[]', space=smem, size = 0x4, offset = 0x4, fixed_abs, tag = 'smem constant byte address 0x4 - core index']
  #allocation1 [shape = 'u32[144,128]{1,0:T(1,128)}', space=vmem, size = 0x12000, scoped, tag = 'internal scratch']
  #allocation2 [shape = 'f32[1]{0:T(128)S(6)}', space=smem, size = 0x200, scoped, tag = 'scoped memory for tpu_custom_call.1']
  %s0 = inlined_call_operand.<no memory space> [shape: f32[1], index: 0, kind: input, shape index: {}]
  %s1 = inlined_call_operand.hbm [shape: f32[16,128], index: 1, kind: input, shape index: {}]
  %s2 = inlined_call_operand.hbm [shape: f32[16,128], index: 2, kind: output, shape index: {}]
  %s3 = sld [smem:[#allocation0]]
  $region45: #{tpu_custom_call.1} parent=0
    _
  %s5 = ssub.s32 1, %s3
  %s6 = scalar_select 0, %s5, %s3
  %7 = sst [smem:[#allocation2]] %s0
  $region1: #{tpu_custom_call.1} parent=0
    #allocation3 [shape = 'u8[8192]{0}', space=vmem, size = 0x2000, scoped, tag = 'input window, operand 1']
    #allocation4 [shape = 's32[2]{0}', space=sflag, size = 0x8, scoped, tag = 'scoped memory for tpu_custom_call.1']
    #allocation5 [shape = 's32[2]{0}', space=sflag, size = 0x8, scoped, tag = 'scoped memory for tpu_custom_call.1']
    #allocation6 [shape = 'u8[8192]{0}', space=vmem, size = 0x2000, scoped, tag = 'output window, operand 0']
    %8 = vsyncpa [#allocation4], 0
    %s9 = scalar_lea.sflag [#allocation4], 1
    %10 = vsyncpa %s9, 0
    %11 = vsyncpa [#allocation5], 0
    %s12 = scalar_lea.sflag [#allocation5], 1
    %13 = vsyncpa %s12, 0
    loop: start=0, step=1, limit=4
    $region2: #{tpu_custom_call.1} parent=1 // loop_pre_header
      _
    $region3: #{tpu_custom_call.1} parent=1 // loop_header
      %s15 = sphi 0, %s19
      %p16 = scmp.ge.s32.totalorder %s15, 4
      %s22 = sphi 0, %s34
      %s23 = sphi 0, %s30
      %s24 = sphi 0, %s22
      %s25 = sphi 0, %s23
      %s26 = sphi 0, %s24
      %s27 = sphi 0, %s25
      %s35 = sphi 0, %s35
      %s37 = sphi 0, %s35
      %s38 = sphi 0, %s37
      %s52 = sphi 0, %s38
      %s60 = sphi 0, %s62
      %s63 = sphi 0, %s60
      %s64 = sphi 0, %s63
      %s80 = sphi 0, %s64
      %s88 = sphi 0, %s90
      %s91 = sphi 0, %s88
      %s92 = sphi 0, %s91
      %s108 = sphi 0, %s92
    $region4: #{tpu_custom_call.1} parent=1 // loop_header_branch
      %18 = sbr.rel (%p16) target = $region8
    $region5: #{tpu_custom_call.1} parent=1 // loop_body
      %s20 = ssub.s32 %s15, 1
      %s21 = ssub.s32 %s15, 2
      %s28 = sadd.s32 1, %s23
      %p29 = scmp.ge.s32.totalorder %s28, 1
      %s30 = scalar_select %p29, 0, %s28
      %s31 = sadd.s32 1, %s22
      %s32 = scalar_select %p29, %s31, %s22
      %p33 = scmp.ge.s32.totalorder %s32, 2
      %s34 = scalar_select %p33, 0, %s32
      %s36 = sadd.s32 %s35, 1
      %p39 = scmp.eq.s32.totalorder %s15, 1
      %p40 = scmp.ne.s32.totalorder %s35, %s37
      %p41 = scmp.eq.s32.totalorder %s15, 0
      %p42 = por %p40, %p41
      %p43 = scmp.ne.s32.totalorder %s35, %s37
      %p44 = scmp.eq.s32.totalorder %s20, 1
      %p45 = por %p43, %p44
      %p46 = scmp.ne.s32.totalorder %s37, %s38
      %p47 = scmp.eq.s32.totalorder %s20, 0
      %p48 = por %p46, %p47
      %p49 = scmp.ne.s32.totalorder %s37, %s38
      %p50 = scmp.eq.s32.totalorder %s21, 1
      %p51 = por %p49, %p50
      %p53 = scmp.ne.s32.totalorder %s38, %s52
      %p54 = scmp.eq.s32.totalorder %s21, 0
      %p55 = por %p53, %p54
      %s56 = ssub.s32 %s22, %s34
      %s57 = ssub.s32 %s23, %s30
      %s58 = sor.u32 %s56, %s57
      %p59 = scmp.eq.s32.totalorder %s58, 0
      %s61 = sadd.s32 %s60, 1
      %s62 = scalar_select %p59, %s60, %s61
      %p65 = pneg %p59
      %p66 = scmp.eq.s32.totalorder %s15, 1
      %p67 = por %p65, %p66
      %p68 = scmp.ne.s32.totalorder %s60, %s63
      %p69 = scmp.eq.s32.totalorder %s15, 0
      %p70 = por %p68, %p69
      %p71 = scmp.ne.s32.totalorder %s60, %s63
      %p72 = scmp.eq.s32.totalorder %s20, 1
      %p73 = por %p71, %p72
      %p74 = scmp.ne.s32.totalorder %s63, %s64
      %p75 = scmp.eq.s32.totalorder %s20, 0
      %p76 = por %p74, %p75
      %p77 = scmp.ne.s32.totalorder %s63, %s64
      %p78 = scmp.eq.s32.totalorder %s21, 1
      %p79 = por %p77, %p78
      %p81 = scmp.ne.s32.totalorder %s64, %s80
      %p82 = scmp.eq.s32.totalorder %s21, 0
      %p83 = por %p81, %p82
      %s84 = ssub.s32 %s22, %s34
      %s85 = ssub.s32 %s23, %s30
      %s86 = sor.u32 %s84, %s85
      %p87 = scmp.eq.s32.totalorder %s86, 0
      %s89 = sadd.s32 %s88, 1
      %s90 = scalar_select %p87, %s88, %s89
      %p93 = pneg %p87
      %p94 = scmp.eq.s32.totalorder %s15, 1
      %p95 = por %p93, %p94
      %p96 = scmp.ne.s32.totalorder %s88, %s91
      %p97 = scmp.eq.s32.totalorder %s15, 0
      %p98 = por %p96, %p97
      %p99 = scmp.ne.s32.totalorder %s88, %s91
      %p100 = scmp.eq.s32.totalorder %s20, 1
      %p101 = por %p99, %p100
      %p102 = scmp.ne.s32.totalorder %s91, %s92
      %p103 = scmp.eq.s32.totalorder %s20, 0
      %p104 = por %p102, %p103
      %p105 = scmp.ne.s32.totalorder %s91, %s92
      %p106 = scmp.eq.s32.totalorder %s21, 1
      %p107 = por %p105, %p106
      %p109 = scmp.ne.s32.totalorder %s92, %s108
      %p110 = scmp.eq.s32.totalorder %s21, 0
      %p111 = por %p109, %p110
      %p112 = scmp.le.s32.totalorder 1, %s15
      %p113 = scmp.lt.s32.totalorder %s15, 3
      %p114 = pnand %p112, %p113
      %p115 = pneg %p114
      // Predicated region
      $region9: #{tpu_custom_call.1} parent=5 // pred_check
        _
      $region10: #{tpu_custom_call.1} parent=5 // pred_check_branch
        %117 = sbr.rel (%p114) target = $region12
      $region11: #{tpu_custom_call.1} parent=5 // pred_region
        %s118 = ssub.s32 %s15, 1
        // Predicated region
        $region13: #{tpu_custom_call.1} parent=11 // pred_check
          %p119 = pneg %p48
        $region14: #{tpu_custom_call.1} parent=11 // pred_check_branch
          %121 = sbr.rel (%p119) target = $region16
        $region15: #{tpu_custom_call.1} parent=11 // pred_region
          _
        $region16: #{tpu_custom_call.1} parent=11 // pred_fallthru
          _
      $region12: #{tpu_custom_call.1} parent=5 // pred_fallthru
        _
      %p122 = scmp.lt.s32.totalorder %s15, 2
      // Predicated region
      $region17: #{tpu_custom_call.1} parent=5 // pred_check
        %p123 = pneg %p122
      $region18: #{tpu_custom_call.1} parent=5 // pred_check_branch
        %125 = sbr.rel (%p123) target = $region20
      $region19: #{tpu_custom_call.1} parent=5 // pred_region
        // Predicated region
        $region21: #{tpu_custom_call.1} parent=19 // pred_check
          %p126 = pneg %p70
        $region22: #{tpu_custom_call.1} parent=19 // pred_check_branch
          %128 = sbr.rel (%p126) target = $region24
        $region23: #{tpu_custom_call.1} parent=19 // pred_region
          %s129 = sand.u32 %s60, 1
          %s130 = scalar_lea.sflag [#allocation4], %s129
          %s131 = sand.u32 %s60, 1
          %s132 = smul.addr %s131, 8
          %s133 = scalar_lea.vmem [#allocation3], %s132
          %s135 = ssub.s32 128, 128
          %136 = vsyncadd %s130, %s135
          %s137 = sadd.s32 %s23, %s22
          %s138 = smul.addr %s137, 128
          %s139 = scalar_lea.hbm %s1, %s138
          %s141 = sshll.u32 %s133, 4
          %s142 = int_to_ptr.vmem [resolvable:$true] %s141
          %144 = dma.hbm_to_vmem [thread:$0]  %s139, 128, %s142, %s130
        $region24: #{tpu_custom_call.1} parent=19 // pred_fallthru
          _
      $region20: #{tpu_custom_call.1} parent=5 // pred_fallthru
        _
      %p145 = scmp.le.s32.totalorder 1, %s15
      %p146 = scmp.lt.s32.totalorder %s15, 3
      %p147 = pnand %p145, %p146
      %p148 = pneg %p147
      // Predicated region
      $region25: #{tpu_custom_call.1} parent=5 // pred_check
        _
      $region26: #{tpu_custom_call.1} parent=5 // pred_check_branch
        %150 = sbr.rel (%p147) target = $region28
      $region27: #{tpu_custom_call.1} parent=5 // pred_region
        %s151 = ssub.s32 %s15, 1
        %s152 = sand.u32 %s63, 1
        %s153 = scalar_lea.sflag [#allocation4], %s152
        %s154 = sand.u32 %s63, 1
        %s155 = smul.addr %s154, 8
        %s156 = scalar_lea.vmem [#allocation3], %s155
        // Predicated region
        $region29: #{tpu_custom_call.1} parent=27 // pred_check
          %p157 = pneg %p76
        $region30: #{tpu_custom_call.1} parent=27 // pred_check_branch
          %159 = sbr.rel (%p157) target = $region32
        $region31: #{tpu_custom_call.1} parent=27 // pred_region
          %160 = dma.done %s153, 128
        $region32: #{tpu_custom_call.1} parent=27 // pred_fallthru
          _
        %p161 = pneg %p48
        %p162 = pneg %p45
        %s163 = sand.u32 %s63, 1
        %s164 = scalar_lea.sflag [#allocation4], %s163
        %s165 = sand.u32 %s63, 1
        %s166 = smul.addr %s165, 8
        %s167 = scalar_lea.vmem [#allocation3], %s166
        %p168 = pneg %p76
        %p169 = pneg %p73
        %p170 = pneg %p104
        %p171 = pneg %p101
        %s172 = sand.u32 %s91, 1
        %s173 = scalar_lea.sflag [#allocation5], %s172
        %s174 = sand.u32 %s91, 1
        %s175 = smul.addr %s174, 8
        %s176 = scalar_lea.vmem [#allocation6], %s175
        %s177 = sld [smem:[#allocation2]]
        %v178 = vld [vmem:[%s156] sm:$0xff]
        %v179 = vand.u32 2147483647, %v178
        %v180 = vstv %s177
        %v181 = vmul.f32 %v179, %v180
        %v182 = vmul.f32 %v181, 1.442695
        %v183 = vpow.pop %v182
        %184 = vst [vmem:[%s176] sm:$0xff] %v183
        %s185 = sand.u32 %s91, 1
        %s186 = scalar_lea.sflag [#allocation5], %s185
        %s187 = sand.u32 %s91, 1
        %s188 = smul.addr %s187, 8
        %s189 = scalar_lea.vmem [#allocation6], %s188
        // Predicated region
        $region33: #{tpu_custom_call.1} parent=27 // pred_check
          %p190 = pneg %p101
        $region34: #{tpu_custom_call.1} parent=27 // pred_check_branch
          %192 = sbr.rel (%p190) target = $region36
        $region35: #{tpu_custom_call.1} parent=27 // pred_region
          %s194 = ssub.s32 128, 128
          %195 = vsyncadd %s186, %s194
          %s196 = sadd.s32 %s25, %s24
          %s197 = smul.addr %s196, 128
          %s198 = scalar_lea.hbm %s2, %s197
          %s200 = sshll.u32 %s189, 4
          %s201 = int_to_ptr.vmem [resolvable:$true] %s200
          %203 = dma.vmem_to_hbm [thread:$0]  %s201, 128, %s198, %s186
        $region36: #{tpu_custom_call.1} parent=27 // pred_fallthru
          _
      $region28: #{tpu_custom_call.1} parent=5 // pred_fallthru
        _
      %p204 = scmp.le.s32.totalorder 2, %s15
      // Predicated region
      $region37: #{tpu_custom_call.1} parent=5 // pred_check
        %p205 = pneg %p204
      $region38: #{tpu_custom_call.1} parent=5 // pred_check_branch
        %207 = sbr.rel (%p205) target = $region40
      $region39: #{tpu_custom_call.1} parent=5 // pred_region
        %s208 = ssub.s32 %s15, 2
        // Predicated region
        $region41: #{tpu_custom_call.1} parent=39 // pred_check
          %p209 = pneg %p107
        $region42: #{tpu_custom_call.1} parent=39 // pred_check_branch
          %211 = sbr.rel (%p209) target = $region44
        $region43: #{tpu_custom_call.1} parent=39 // pred_region
          %s212 = sand.u32 %s92, 1
          %s213 = scalar_lea.sflag [#allocation5], %s212
          %s214 = sand.u32 %s92, 1
          %s215 = smul.addr %s214, 8
          %s216 = scalar_lea.vmem [#allocation6], %s215
          %217 = dma.done %s213, 128
        $region44: #{tpu_custom_call.1} parent=39 // pred_fallthru
          _
      $region40: #{tpu_custom_call.1} parent=5 // pred_fallthru
        _
    $region6: #{tpu_custom_call.1} parent=1 // loop_footer
      %s19 = sadd.s32 1, %s15
    $region7: #{tpu_custom_call.1} parent=1 // loop_footer_branch
      %14 = sbr.rel target = $region3
    $region8: #{tpu_custom_call.1} parent=1 // loop_exit
      _
    %218 = vsyncpa [#allocation4], 1
    %s219 = scalar_lea.sflag [#allocation4], 1
    %220 = vsyncpa %s219, 1
    %221 = vsyncpa [#allocation5], 1
    %s222 = scalar_lea.sflag [#allocation5], 1
    %223 = vsyncpa %s222, 1

</llo_original>
